<compile_context>
chip_gen: v5e
topology: v5e:2x2
jax: 0.10.0
libtpu: 0.0.40
codegen_flags: <defaults>
</compile_context>

<pallas_src>
import functools

import jax
import jax.numpy as jnp
from jax import lax
from jax.experimental import pallas as pl
from jax.experimental.pallas import tpu as pltpu


def _round_up(x, m):
    return ((x + m - 1) // m) * m


def _mhl_kernel(x_ref, w_ref, b_ref, o_ref, acc_ref):
    """Computes one (tm, tn) output tile; grid axis 2 (k) is the reduction."""
    k = pl.program_id(2)

    @pl.when(k == 0)
    def _init():
        acc_ref[...] = jnp.zeros_like(acc_ref)

    # x tile: (tm, tk); w tile: (tn, tk) in PyTorch layout -> contract dim 1 with dim 1
    # so the MXU computes x @ W^T directly (no wrapper-side transpose of the weight).
    acc_ref[...] += lax.dot_general(
        x_ref[...],
        w_ref[...],
        dimension_numbers=(((1,), (1,)), ((), ())),
        preferred_element_type=jnp.float32,
    )

    @pl.when(k == pl.num_programs(2) - 1)
    def _finalize():
        # Bias add + cast once per output tile (VPU work hidden under the MXU).
        o_ref[...] = (acc_ref[...] + b_ref[...]).astype(o_ref.dtype)


@functools.partial(jax.jit, static_argnames=("num", "tm", "tn", "tk"))
def multi_head_linear(x, weight, bias, num, *, tm=256, tn=256, tk=256):
    """Pallas implementation of MultiHeadLinear.forward.

    Args:
      x:      (N, in_features)
      weight: (out_features*num, in_features)  -- PyTorch nn.Linear layout (NOT transposed)
      bias:   (out_features*num,)
      num:    number of heads
    Returns:
      (N*num, out_features)
    """
    N, K = x.shape
    total_out = weight.shape[0]
    assert weight.shape[1] == K
    assert total_out % num == 0
    out_features = total_out // num

    # Clamp tile sizes to the (aligned) problem size; keep TPU-friendly alignment:
    # sublane multiple of 8 for M, lane multiple of 128 for N/K.
    tm = min(tm, _round_up(N, 8))
    tn = min(tn, _round_up(total_out, 128))
    tk = min(tk, _round_up(K, 128))

    Np = _round_up(N, tm)
    TOp = _round_up(total_out, tn)
    Kp = _round_up(K, tk)

    # Zero-pad to exact tile multiples (zeros along K are mathematically inert;
    # padded rows / output columns are sliced away below).
    xp = x if (Np, Kp) == (N, K) else jnp.pad(x, ((0, Np - N), (0, Kp - K)))
    wp = (weight if (TOp, Kp) == (total_out, K)
          else jnp.pad(weight, ((0, TOp - total_out), (0, Kp - K))))
    bp = bias if TOp == total_out else jnp.pad(bias, (0, TOp - total_out))
    b_row = bp.reshape(1, TOp)  # 2-D for lane-dense broadcast inside the kernel

    grid = (Np // tm, TOp // tn, Kp // tk)

    itemsize = jnp.dtype(x.dtype).itemsize
    cost = pl.CostEstimate(
        flops=2 * N * K * total_out,
        transcendentals=0,
        bytes_accessed=(N * K + total_out * K + total_out) * itemsize
        + N * total_out * itemsize,
    )

    y = pl.pallas_call(
        _mhl_kernel,
        out_shape=jax.ShapeDtypeStruct((Np, TOp), x.dtype),
        grid_spec=pltpu.PrefetchScalarGridSpec(
            num_scalar_prefetch=0,
            grid=grid,
            in_specs=[
                pl.BlockSpec((tm, tk), lambda i, j, k: (i, k)),   # x tile
                pl.BlockSpec((tn, tk), lambda i, j, k: (j, k)),   # W tile (PyTorch layout)
                pl.BlockSpec((1, tn), lambda i, j, k: (0, j)),    # bias row tile
            ],
            out_specs=pl.BlockSpec((tm, tn), lambda i, j, k: (i, j)),
            scratch_shapes=[pltpu.VMEM((tm, tn), jnp.float32)],
        ),
        compiler_params=pltpu.CompilerParams(
            dimension_semantics=("parallel", "parallel", "arbitrary"),
            vmem_limit_bytes=64 << 20,
        ),
        cost_estimate=cost,
    )(xp, wp, b_row)

    # Strip padding, then the equivalent of torch .view(-1, num_feat // num).
    y = y[:N, :total_out]
    return y.reshape(N * num, out_features)


def _reference(x, weight, bias, num):
    total_out = weight.shape[0]
    return (x @ weight.T + bias).reshape(-1, total_out // num)


if __name__ == "__main__":
    key = jax.random.PRNGKey(0)

    # ---- Test 1: small shapes consistent with the module (single grid block). ----
    num = 4
    in_features = 32
    out_features = 8
    batch = 8  # num_image

    kx, kw, kb, key = jax.random.split(key, 4)
    x = jax.random.normal(kx, (batch, in_features), dtype=jnp.float32)
    bound = 1.0 / (in_features ** 0.5)
    weight = jax.random.uniform(
        kw, (out_features * num, in_features), dtype=jnp.float32,
        minval=-bound, maxval=bound)
    bias = jax.random.uniform(
        kb, (out_features * num,), dtype=jnp.float32,
        minval=-bound, maxval=bound)

    out = jax.block_until_ready(multi_head_linear(x, weight, bias, num))
    ref = _reference(x, weight, bias, num)
    assert out.shape == (batch * num, out_features)
    assert jnp.allclose(out, ref, atol=1e-5, rtol=1e-5)

    # ---- Test 2: unaligned shapes with small tiles to exercise the multi-block
    # grid and the k-axis accumulation / padding path. ----
    num2 = 3
    in_features2 = 300      # -> Kp = 384 with tk=128 (3 reduction steps)
    out_features2 = 50      # -> total_out = 150, TOp = 256 with tn=128
    batch2 = 20             # -> Np = 24 with tm=8

    kx2, kw2, kb2, key = jax.random.split(key, 4)
    x2 = jax.random.normal(kx2, (batch2, in_features2), dtype=jnp.float32)
    bound2 = 1.0 / (in_features2 ** 0.5)
    weight2 = jax.random.uniform(
        kw2, (out_features2 * num2, in_features2), dtype=jnp.float32,
        minval=-bound2, maxval=bound2)
    bias2 = jax.random.uniform(
        kb2, (out_features2 * num2,), dtype=jnp.float32,
        minval=-bound2, maxval=bound2)

    out2 = jax.block_until_ready(
        multi_head_linear(x2, weight2, bias2, num2, tm=8, tn=128, tk=128))
    ref2 = _reference(x2, weight2, bias2, num2)
    assert out2.shape == (batch2 * num2, out_features2)
    assert jnp.allclose(out2, ref2, atol=1e-4, rtol=1e-4)

    print("KERNEL_OK")
</pallas_src>

<mosaic_0001>
module attributes {stable_mosaic.version = 11 : i64} {
  func.func @_mhl_kernel(%arg0: i32, %arg1: i32, %arg2: i32, %arg3: memref<8x128xf32, #tpu.memory_space<vmem>>, %arg4: memref<128x128xf32, #tpu.memory_space<vmem>>, %arg5: memref<1x128xf32, #tpu.memory_space<vmem>>, %arg6: memref<8x128xf32, #tpu.memory_space<vmem>>, %arg7: memref<8x128xf32, #tpu.memory_space<vmem>>) attributes {dimension_semantics = [#tpu.dimension_semantics<parallel>, #tpu.dimension_semantics<parallel>, #tpu.dimension_semantics<arbitrary>], iteration_bounds = array<i64: 1, 1, 1>, scalar_prefetch = 0 : i64, scratch_operands = 1 : i64, tpu.core_type = #tpu.core_type<tc>, window_params = [{transform_indices = @transform_0, window_bounds = array<i64: 8, 128>}, {transform_indices = @transform_1, window_bounds = array<i64: 128, 128>}, {transform_indices = @transform_2, window_bounds = array<i64: 1, 128>}, {transform_indices = @transform_3, window_bounds = array<i64: 8, 128>}]} {
    %c0_i32 = arith.constant 0 : i32
    %0 = arith.cmpi eq, %arg2, %c0_i32 : i32
    %1 = arith.extui %0 : i1 to i32
    %c0_i32_0 = arith.constant 0 : i32
    %2 = arith.cmpi ne, %1, %c0_i32_0 : i32
    scf.if %2 {
      %cst_10 = arith.constant 0.000000e+00 : f32
      %12 = vector.broadcast %cst_10 : f32 to vector<8x128xf32>
      %c0_11 = arith.constant 0 : index
      %c0_12 = arith.constant 0 : index
      %13 = vector.load %arg7[%c0_11, %c0_12] : memref<8x128xf32, #tpu.memory_space<vmem>>, vector<8x128xf32>
      tpu.vector_store %arg7[%c0_11, %c0_12], %12 {strides = array<i32>} : memref<8x128xf32, #tpu.memory_space<vmem>>, vector<8x128xf32>,
    } else {
    }
    %c0 = arith.constant 0 : index
    %c0_1 = arith.constant 0 : index
    %3 = vector.load %arg7[%c0, %c0_1] : memref<8x128xf32, #tpu.memory_space<vmem>>, vector<8x128xf32>
    %c0_2 = arith.constant 0 : index
    %c0_3 = arith.constant 0 : index
    %4 = vector.load %arg3[%c0_2, %c0_3] : memref<8x128xf32, #tpu.memory_space<vmem>>, vector<8x128xf32>
    %c0_4 = arith.constant 0 : index
    %c0_5 = arith.constant 0 : index
    %5 = vector.load %arg4[%c0_4, %c0_5] : memref<128x128xf32, #tpu.memory_space<vmem>>, vector<128x128xf32>
    %cst = arith.constant dense<0.000000e+00> : vector<8x128xf32>
    %6 = tpu.matmul %4, %5, %cst {dimension_numbers = #tpu.dot_dimension_numbers<[1], [1], [0], [0], [0, 0, 1, 0], [], []>} : vector<8x128xf32>, vector<128x128xf32>, vector<8x128xf32> -> vector<8x128xf32>
    %7 = arith.addf %3, %6 : vector<8x128xf32>
    %c0_6 = arith.constant 0 : index
    %c0_7 = arith.constant 0 : index
    %8 = vector.load %arg7[%c0_6, %c0_7] : memref<8x128xf32, #tpu.memory_space<vmem>>, vector<8x128xf32>
    tpu.vector_store %arg7[%c0_6, %c0_7], %7 {strides = array<i32>} : memref<8x128xf32, #tpu.memory_space<vmem>>, vector<8x128xf32>,
    %c0_i32_8 = arith.constant 0 : i32
    %9 = arith.cmpi eq, %arg2, %c0_i32_8 : i32
    %10 = arith.extui %9 : i1 to i32
    %c0_i32_9 = arith.constant 0 : i32
    %11 = arith.cmpi ne, %10, %c0_i32_9 : i32
    scf.if %11 {
      %c0_10 = arith.constant 0 : index
      %c0_11 = arith.constant 0 : index
      %12 = vector.load %arg7[%c0_10, %c0_11] : memref<8x128xf32, #tpu.memory_space<vmem>>, vector<8x128xf32>
      %c0_12 = arith.constant 0 : index
      %c0_13 = arith.constant 0 : index
      %13 = vector.load %arg5[%c0_12, %c0_13] : memref<1x128xf32, #tpu.memory_space<vmem>>, vector<1x128xf32>
      %14 = vector.broadcast %13 : vector<1x128xf32> to vector<8x128xf32>
      %15 = arith.addf %12, %14 : vector<8x128xf32>
      %c0_14 = arith.constant 0 : index
      %c0_15 = arith.constant 0 : index
      %16 = vector.load %arg6[%c0_14, %c0_15] : memref<8x128xf32, #tpu.memory_space<vmem>>, vector<8x128xf32>
      tpu.vector_store %arg6[%c0_14, %c0_15], %15 {strides = array<i32>} : memref<8x128xf32, #tpu.memory_space<vmem>>, vector<8x128xf32>,
    } else {
    }
    return
  }
  func.func @transform_0(%arg0: i32, %arg1: i32, %arg2: i32) -> (i32, i32) {
    %c0_i32 = arith.constant 0 : i32
    return %arg0, %arg2 : i32, i32
  }
  func.func @transform_1(%arg0: i32, %arg1: i32, %arg2: i32) -> (i32, i32) {
    %c0_i32 = arith.constant 0 : i32
    return %arg1, %arg2 : i32, i32
  }
  func.func @transform_2(%arg0: i32, %arg1: i32, %arg2: i32) -> (i32, i32) {
    %c0_i32 = arith.constant 0 : i32
    %c0_i32_0 = arith.constant 0 : i32
    return %c0_i32, %arg1 : i32, i32
  }
  func.func @transform_3(%arg0: i32, %arg1: i32, %arg2: i32) -> (i32, i32) {
    %c0_i32 = arith.constant 0 : i32
    return %arg0, %arg1 : i32, i32
  }
}

</mosaic_0001>

<llo_original>
// kernel: multi_head_linear.1
$region0: #{multi_head_linear.1}
  #allocation0 [shape = 'u32[]', space=smem, size = 0x4, offset = 0x4, fixed_abs, tag = 'smem constant byte address 0x4 - core index']
  #allocation1 [shape = 'u32[72,128]{1,0:T(1,128)}', space=vmem, size = 0x9000, scoped, tag = 'internal scratch']
  #allocation2 [shape = 'f32[8,128]{1,0:T(8,128)}', space=vmem, size = 0x1000, scoped, tag = 'scratch operand']
  %s0 = inlined_call_operand.vmem [shape: f32[8,128], index: 0, kind: input, shape index: {}]
  %s1 = inlined_call_operand.vmem [shape: f32[128,128], index: 1, kind: input, shape index: {}]
  %s2 = inlined_call_operand.vmem [shape: f32[1,128], index: 2, kind: input, shape index: {}]
  %s3 = inlined_call_operand.vmem [shape: f32[8,128], index: 3, kind: output, shape index: {}]
  %s4 = sld [smem:[#allocation0]]
  $region30: #{multi_head_linear.1} parent=0
    _
  %s6 = ssub.s32 1, %s4
  %s7 = scalar_select 0, %s6, %s4
  // Predicated region
  $region2: #{multi_head_linear.1} parent=0 // pred_check
    _
  $region3: #{multi_head_linear.1} parent=0 // pred_check_branch
    %9 = sbr.rel (0) target = $region5
  $region4: #{multi_head_linear.1} parent=0 // pred_region
    _
  $region5: #{multi_head_linear.1} parent=0 // pred_fallthru
    _
  // Predicated region
  $region6: #{multi_head_linear.1} parent=0 // pred_check
    _
  $region7: #{multi_head_linear.1} parent=0 // pred_check_branch
    %11 = sbr.rel (0) target = $region9
  $region8: #{multi_head_linear.1} parent=0 // pred_region
    _
  $region9: #{multi_head_linear.1} parent=0 // pred_fallthru
    _
  // Predicated region
  $region10: #{multi_head_linear.1} parent=0 // pred_check
    _
  $region11: #{multi_head_linear.1} parent=0 // pred_check_branch
    %13 = sbr.rel (0) target = $region13
  $region12: #{multi_head_linear.1} parent=0 // pred_region
    _
  $region13: #{multi_head_linear.1} parent=0 // pred_fallthru
    _
  %p14 = scmp.eq.s32.totalorder 0, 0
  // Predicated region
  $region14: #{multi_head_linear.1} parent=0 // pred_check
    %p15 = pneg %p14
  $region15: #{multi_head_linear.1} parent=0 // pred_check_branch
    %17 = sbr.rel (%p15) target = $region17
  $region16: #{multi_head_linear.1} parent=0 // pred_region
    %18 = vst [vmem:[#allocation2] sm:$0xff] 0.0
  $region17: #{multi_head_linear.1} parent=0 // pred_fallthru
    _
  %v19 = vld [vmem:[#allocation2] sm:$0xff]
  %v20 = vld [vmem:[%s0] sm:$0xff]
  %v21 = vld [vmem:[%s1] sm:$0xff]
  %v22 = vld [vmem:[%s1 + $0x8] sm:$0xff]
  %v23 = vld [vmem:[%s1 + $0x10] sm:$0xff]
  %v24 = vld [vmem:[%s1 + $0x18] sm:$0xff]
  %v25 = vld [vmem:[%s1 + $0x20] sm:$0xff]
  %v26 = vld [vmem:[%s1 + $0x28] sm:$0xff]
  %v27 = vld [vmem:[%s1 + $0x30] sm:$0xff]
  %v28 = vld [vmem:[%s1 + $0x38] sm:$0xff]
  %v29 = vld [vmem:[%s1 + $0x40] sm:$0xff]
  %v30 = vld [vmem:[%s1 + $0x48] sm:$0xff]
  %v31 = vld [vmem:[%s1 + $0x50] sm:$0xff]
  %v32 = vld [vmem:[%s1 + $0x58] sm:$0xff]
  %v33 = vld [vmem:[%s1 + $0x60] sm:$0xff]
  %v34 = vld [vmem:[%s1 + $0x68] sm:$0xff]
  %v35 = vld [vmem:[%s1 + $0x70] sm:$0xff]
  %v36 = vld [vmem:[%s1 + $0x78] sm:$0xff]
  %37 = vmatpush.xpose.msra.mxu0 %v36
  %38 = vmatpush.xpose.msra.mxu0 %v35
  %39 = vmatpush.xpose.msra.mxu0 %v34
  %40 = vmatpush.xpose.msra.mxu0 %v33
  %41 = vmatpush.xpose.msra.mxu0 %v32
  %42 = vmatpush.xpose.msra.mxu0 %v31
  %43 = vmatpush.xpose.msra.mxu0 %v30
  %44 = vmatpush.xpose.msra.mxu0 %v29
  %45 = vmatpush.xpose.msra.mxu0 %v28
  %46 = vmatpush.xpose.msra.mxu0 %v27
  %47 = vmatpush.xpose.msra.mxu0 %v26
  %48 = vmatpush.xpose.msra.mxu0 %v25
  %49 = vmatpush.xpose.msra.mxu0 %v24
  %50 = vmatpush.xpose.msra.mxu0 %v23
  %51 = vmatpush.xpose.msra.mxu0 %v22
  %52 = vmatpush.xpose.msra.mxu0 %v21
  %53 = vmatmul.f32.gmra.mxu0 %v20
  %v54 = vpop.f32.mrf.mxu0
  %v55 = vadd.f32 0.0, %v54
  %56 = vdwg.mxu0
  %v57 = vadd.f32 %v19, %v55
  %58 = vst [vmem:[#allocation2] sm:$0xff] %v57
  // Predicated region
  $region18: #{multi_head_linear.1} parent=0 // pred_check
    %p59 = pneg %p14
  $region19: #{multi_head_linear.1} parent=0 // pred_check_branch
    %61 = sbr.rel (%p59) target = $region21
  $region20: #{multi_head_linear.1} parent=0 // pred_region
    %v62 = vld [vmem:[#allocation2] sm:$0xff]
    %v63 = vld [vmem:[%s2] sm:$0x1]
    %v65 = vperm.slane %v63, 0
    %v67 = vadd.f32 %v62, %v65
    %68 = vst [vmem:[%s3] sm:$0xff] %v67
  $region21: #{multi_head_linear.1} parent=0 // pred_fallthru
    _
  // Predicated region
  $region22: #{multi_head_linear.1} parent=0 // pred_check
    _
  $region23: #{multi_head_linear.1} parent=0 // pred_check_branch
    %70 = sbr.rel (0) target = $region25
  $region24: #{multi_head_linear.1} parent=0 // pred_region
    _
  $region25: #{multi_head_linear.1} parent=0 // pred_fallthru
    _
  // Predicated region
  $region26: #{multi_head_linear.1} parent=0 // pred_check
    _
  $region27: #{multi_head_linear.1} parent=0 // pred_check_branch
    %72 = sbr.rel (0) target = $region29
  $region28: #{multi_head_linear.1} parent=0 // pred_region
    _
  $region29: #{multi_head_linear.1} parent=0 // pred_fallthru
    _

</llo_original>
